<compile_context>
chip_gen: v7x
topology: tpu7x:2x2x1
jax: 0.10.0
libtpu: 0.0.40
codegen_flags: <defaults>
</compile_context>

<pallas_src>
import functools
import math

import jax
import jax.numpy as jnp
from jax.experimental import pallas as pl
from jax.experimental.pallas import tpu as pltpu


_NEG_PAD = -40.0  # pad logit: sigmoid(-40) ~ 4e-18 -> padded rows/lanes contribute ~0 loss


def _pack_layout(C):
    """Choose (Cp, k): classes padded to Cp, k samples packed per row, k*Cp % 128 == 0."""
    if C % 128 == 0:
        return C, 1
    if C >= 112:                          # wide heads: pad classes straight to a 128 multiple
        return ((C + 127) // 128) * 128, 1
    Cp = ((C + 15) // 16) * 16            # narrow heads: pad to 16 so the pack factor stays <= 8
    return Cp, 128 // math.gcd(Cp, 128)


def _choose_tile_rows(R, W, elem_bytes, max_block_bytes):
    """Pick (tile_rows, grid_len); rows may need padding up to grid_len * tile_rows."""
    if R <= 8:
        return 8, 1
    t_cap = max(8, (max_block_bytes // max(1, W * elem_bytes)) // 8 * 8)
    if R >= 16:   # keep >= 2 grid steps so both v7x TensorCores get work
        t_cap = min(t_cap, max(8, (((R + 1) // 2) + 7) // 8 * 8))
    # Prefer an exact multiple-of-8 divisor of R (avoids a row-padding copy of pred/psi),
    # but never at the price of tiny tiles.
    for cand in range(t_cap, max(64, t_cap // 4) - 1, -8):
        if R % cand == 0:
            return cand, R // cand
    grid = -(-R // t_cap)
    tile = ((-(-R // grid)) + 7) // 8 * 8
    grid = -(-R // tile)
    return tile, grid


def _padded_block_bytes(block_shape, dtype):
    dims = list(block_shape)
    dims[-1] = -(-dims[-1] // 128) * 128
    if len(dims) >= 2:
        dims[-2] = -(-dims[-2] // 8) * 8
    return math.prod(dims) * jnp.dtype(dtype).itemsize


def _lf_loss_kernel(*refs, gamma, alpha, eta, Cp, k, loss_weight,
                    use_weight, use_psi, emit_map, approx_recip):
    it = iter(refs)
    pred_ref = next(it)
    target_ref = next(it)
    weight_ref = next(it) if use_weight else None
    psi_ref = next(it) if use_psi else None
    out_ref = next(it)

    x = pred_ref[...].astype(jnp.float32)              # (T, W) logits, W = k*Cp lane-dense
    tgt = target_ref[...]                               # (T, k) int32; sentinel < -W never matches
    W = x.shape[1]

    lane = jax.lax.broadcasted_iota(jnp.int32, (1, W), 1)

    # One-hot positive mask: k lane-broadcast compares; the group offset is added on the tiny
    # (T, 1) column, and background / out-of-range labels use a sentinel so they never match.
    t_b = lane == tgt[:, 0:1]
    for g in range(1, k):
        t_b = t_b | (lane == (tgt[:, g:g + 1] + g * Cp))

    # Focal loss with 2 EUP transcendentals (exp, log) and one near-free approx reciprocal.
    e = jnp.exp(-jnp.abs(x))
    sp = jnp.maximum(x, 0.0) + jnp.log(1.0 + e)         # softplus(x)
    inv_1pe = pl.reciprocal(1.0 + e, approx=True)
    ps = jnp.where(x >= 0.0, 1.0, e) * inv_1pe           # sigmoid(x)
    one_m_ps = jnp.where(x >= 0.0, e, 1.0) * inv_1pe     # 1 - sigmoid(x)

    bce = jnp.minimum(jnp.where(t_b, sp - x, sp), 100.0)  # == clamp(-log p, max=100) as in torch
    pt = jnp.where(t_b, one_m_ps, ps)
    g_int = int(gamma)
    if float(gamma) == float(g_int) and 0 < g_int <= 4:
        pt_pow = pt
        for _ in range(g_int - 1):                        # gamma == 2 -> pt * pt, stays off EUP
            pt_pow = pt_pow * pt
    else:
        pt_pow = jnp.power(pt, gamma)
    loss = bce * jnp.where(t_b, alpha, 1.0 - alpha) * pt_pow

    if use_psi:
        psi = psi_ref[...].astype(jnp.float32)
        denom = one_m_ps + 1e-4
        inv = pl.reciprocal(denom, approx=True) if approx_recip else 1.0 / denom
        loss = loss * jnp.where(t_b, 1.0, (eta - psi) * inv)

    if loss_weight != 1.0:
        loss = loss * loss_weight

    if emit_map:
        if use_weight:
            w = weight_ref[...].astype(jnp.float32)       # (T, k) sample weights
            if k == 1:
                loss = loss * w
            else:
                wexp = None
                for g in range(k):
                    in_g = (lane >= g * Cp) & (lane < (g + 1) * Cp)
                    term = jnp.where(in_g, w[:, g:g + 1], 0.0)
                    wexp = term if wexp is None else wexp + term
                loss = loss * wexp
        out_ref[...] = loss.astype(out_ref.dtype)
    elif use_weight and k > 1:
        # Weighted partial sum without materializing a (T, W) expanded weight: per-group masked
        # lane reduces, then the weight multiplies tiny (T, 1) group sums.
        w = weight_ref[...].astype(jnp.float32)           # (T, k)
        acc = None
        for g in range(k):
            in_g = (lane >= g * Cp) & (lane < (g + 1) * Cp)
            sg = jnp.sum(jnp.where(in_g, loss, 0.0), axis=1, keepdims=True)   # (T, 1)
            term = sg * w[:, g:g + 1]
            acc = term if acc is None else acc + term
        out_ref[...] = jnp.sum(acc, axis=0, keepdims=True)[None]              # (1, 1, 1)
    else:
        if use_weight:                                    # k == 1: single lane broadcast
            loss = loss * weight_ref[...].astype(jnp.float32)
        # Rows-only partial reduce: lane-dense (1, W) partial per tile; wrapper finishes the sum.
        out_ref[...] = jnp.sum(loss, axis=0, keepdims=True)[None]             # (1, 1, W)


def lf_loss(pred, target, weight=None, psi=None, *, gamma=2.0, alpha=0.25, eta=2.0,
            reduction='mean', avg_factor=None, loss_weight=1.0, approx_recip=False):
    """Pallas implementation of LFLoss.forward (use_sigmoid=True).

    pred:   (N, C) float logits
    target: (N,) int labels in [0, C]   (label == C means background / all-zero one-hot row)
    weight: optional (N,) sample-wise weight
    psi:    optional (N, C) localization quality (e.g. IoU) in [0, 1]
    """
    N, C = pred.shape
    target = jnp.asarray(target).astype(jnp.int32).reshape(-1)
    assert target.shape[0] == N
    if weight is not None:
        weight = jnp.asarray(weight).reshape(-1)
        # TODO(synk): elementwise (N, C) loss weights are not plumbed; only sample-wise (N,).
        assert weight.shape[0] == N, "only sample-wise (N,) weights are supported"
    if psi is not None:
        assert psi.shape == (N, C)

    Cp, k = _pack_layout(C)
    W = k * Cp
    R = -(-N // k)

    emit_map = reduction == 'none'
    n_big = 1 + (1 if psi is not None else 0) + (1 if emit_map else 0)
    max_block_bytes = min(8 << 20, (12 << 20) // n_big)
    big_elem = jnp.dtype(pred.dtype).itemsize
    if psi is not None:
        big_elem = max(big_elem, jnp.dtype(psi.dtype).itemsize)
    tile_rows, grid_len = _choose_tile_rows(R, W, big_elem, max_block_bytes)
    R_pad = tile_rows * grid_len
    N_pad = R_pad * k

    # Background (== C) / out-of-range labels get a sentinel that can never match any lane.
    target = jnp.where(target >= C, -(W + 1), target)

    pred_p, psi_p = pred, psi
    if Cp != C:        # pad classes; padded lanes get huge-negative logits -> ~0 loss
        pred_p = jnp.pad(pred_p, ((0, 0), (0, Cp - C)), constant_values=_NEG_PAD)
        if psi is not None:
            psi_p = jnp.pad(psi_p, ((0, 0), (0, Cp - C)))
    if N_pad != N:     # pad rows; padded samples are background with ~0 loss
        pred_p = jnp.pad(pred_p, ((0, N_pad - N), (0, 0)), constant_values=_NEG_PAD)
        target = jnp.pad(target, (0, N_pad - N), constant_values=-(W + 1))
        if psi is not None:
            psi_p = jnp.pad(psi_p, ((0, N_pad - N), (0, 0)))
        if weight is not None:
            weight = jnp.pad(weight, (0, N_pad - N))

    args = [pred_p.reshape(R_pad, W), target.reshape(R_pad, k)]
    in_specs = [pl.BlockSpec((tile_rows, W), lambda i: (i, 0)),
                pl.BlockSpec((tile_rows, k), lambda i: (i, 0))]
    if weight is not None:
        args.append(weight.astype(jnp.float32).reshape(R_pad, k))
        in_specs.append(pl.BlockSpec((tile_rows, k), lambda i: (i, 0)))
    if psi is not None:
        args.append(psi_p.reshape(R_pad, W))
        in_specs.append(pl.BlockSpec((tile_rows, W), lambda i: (i, 0)))

    use_weight = weight is not None
    if emit_map:
        out_specs = pl.BlockSpec((tile_rows, W), lambda i: (i, 0))
        out_shape = jax.ShapeDtypeStruct((R_pad, W), pred.dtype)   # bf16 map when pred is bf16
    elif use_weight and k > 1:
        out_specs = pl.BlockSpec((1, 1, 1), lambda i: (i, 0, 0))
        out_shape = jax.ShapeDtypeStruct((grid_len, 1, 1), jnp.float32)
    else:
        out_specs = pl.BlockSpec((1, 1, W), lambda i: (i, 0, 0))
        out_shape = jax.ShapeDtypeStruct((grid_len, 1, W), jnp.float32)

    # Scoped-VMEM limit from the actual double-buffered block footprint, not the physical max.
    blk_bytes = sum(_padded_block_bytes(s.block_shape, a.dtype) for a, s in zip(args, in_specs))
    blk_bytes += _padded_block_bytes(out_specs.block_shape, out_shape.dtype)
    vmem_limit = max(16 << 20, min(48 << 20, int(2 * blk_bytes * 1.25) + (4 << 20)))

    kernel = functools.partial(
        _lf_loss_kernel, gamma=gamma, alpha=alpha, eta=eta, Cp=Cp, k=k,
        loss_weight=float(loss_weight), use_weight=use_weight, use_psi=psi is not None,
        emit_map=emit_map, approx_recip=approx_recip)

    out = pl.pallas_call(
        kernel,
        grid=(grid_len,),
        in_specs=in_specs,
        out_specs=out_specs,
        out_shape=out_shape,
        compiler_params=pltpu.CompilerParams(
            dimension_semantics=("parallel",),
            vmem_limit_bytes=vmem_limit),
    )(*args)

    if emit_map:
        return out.reshape(N_pad, Cp)[:N, :C]
    total = jnp.sum(out)
    if reduction == 'mean':
        total = total / (N * C) if avg_factor is None else total / avg_factor
    elif reduction != 'sum':
        raise ValueError(f"unsupported reduction: {reduction!r}")
    return total


def _lf_loss_ref_map(pred, target, weight=None, psi=None, gamma=2.0, alpha=0.25, eta=2.0):
    """Pure-JAX elementwise reference mirroring py_ld_focal_loss_with_sigmoid (pre-reduction)."""
    N, C = pred.shape
    ps = jax.nn.sigmoid(pred.astype(jnp.float32))
    t = jax.nn.one_hot(target, C + 1, dtype=jnp.float32)[:, :C]
    pt = (1 - ps) * t + ps * (1 - t)
    fw = (alpha * t + (1 - alpha) * (1 - t)) * jnp.power(pt, gamma)
    bce = -(t * jnp.maximum(jnp.log(ps), -100.0)
            + (1 - t) * jnp.maximum(jnp.log(1 - ps), -100.0))
    loss = bce * fw
    if psi is not None:
        lf_w = (eta - psi.astype(jnp.float32)) / (1 - ps + 1e-4)
        loss = loss * (t + (1 - t) * lf_w)
    if weight is not None:
        loss = loss * weight.astype(jnp.float32)[:, None]
    return loss


if __name__ == "__main__":
    key = jax.random.PRNGKey(0)
    ks = jax.random.split(key, 8)

    # Config A: odd class count (class padding 20->32, k=4), odd row count (row padding),
    # sample weights + psi; mean and 'none' reductions.
    N, C = 200, 20
    pred = jax.random.normal(ks[0], (N, C), dtype=jnp.float32)
    target = jax.random.randint(ks[1], (N,), 0, C + 1, dtype=jnp.int32)   # label == C: background
    weight = jax.random.uniform(ks[2], (N,), dtype=jnp.float32)
    psi = jax.random.uniform(ks[3], (N, C), dtype=jnp.float32)

    ref = _lf_loss_ref_map(pred, target, weight, psi)
    out_mean = jax.block_until_ready(lf_loss(pred, target, weight, psi, reduction='mean'))
    assert jnp.allclose(out_mean, jnp.mean(ref), rtol=1e-2, atol=1e-6), (out_mean, jnp.mean(ref))

    out_none = jax.block_until_ready(lf_loss(pred, target, weight, psi, reduction='none'))
    assert out_none.shape == (N, C)
    assert jnp.allclose(out_none, ref, rtol=1e-2, atol=1e-5), "elementwise loss mismatch"

    # Config B: k == 1 layout (C multiple of 128), no psi / no weight, sum reduction.
    N2, C2 = 192, 128
    pred2 = jax.random.normal(ks[4], (N2, C2), dtype=jnp.float32)
    target2 = jax.random.randint(ks[5], (N2,), 0, C2 + 1, dtype=jnp.int32)
    ref2 = _lf_loss_ref_map(pred2, target2)
    out_sum2 = jax.block_until_ready(lf_loss(pred2, target2, reduction='sum'))
    assert jnp.allclose(out_sum2, jnp.sum(ref2), rtol=1e-2, atol=1e-6), (out_sum2, jnp.sum(ref2))

    # Config C: psi without weight (rows-partial sum path), loss_weight != 1, avg_factor.
    psi2 = jax.random.uniform(ks[6], (N2, C2), dtype=jnp.float32)
    ref3 = _lf_loss_ref_map(pred2, target2, None, psi2)
    out_mean3 = jax.block_until_ready(
        lf_loss(pred2, target2, psi=psi2, reduction='mean', loss_weight=0.5, avg_factor=37.0))
    assert jnp.allclose(out_mean3, 0.5 * jnp.sum(ref3) / 37.0, rtol=1e-2, atol=1e-6)

    # Config D: sample weights with k == 1, mean reduction.
    weight2 = jax.random.uniform(ks[7], (N2,), dtype=jnp.float32)
    ref4 = _lf_loss_ref_map(pred2, target2, weight2)
    out_mean4 = jax.block_until_ready(lf_loss(pred2, target2, weight2, reduction='mean'))
    assert jnp.allclose(out_mean4, jnp.mean(ref4), rtol=1e-2, atol=1e-6)

    print("KERNEL_OK")
</pallas_src>

<mosaic_0001>
module attributes {stable_mosaic.version = 11 : i64} {
  func.func @_lf_loss_kernel(%arg0: i32, %arg1: memref<32x128xf32, #tpu.memory_space<vmem>>, %arg2: memref<32x4xi32, #tpu.memory_space<vmem>>, %arg3: memref<32x4xf32, #tpu.memory_space<vmem>>, %arg4: memref<32x128xf32, #tpu.memory_space<vmem>>, %arg5: memref<1x1x1xf32, #tpu.memory_space<vmem>>) attributes {dimension_semantics = [#tpu.dimension_semantics<parallel>], iteration_bounds = array<i64: 2>, scalar_prefetch = 0 : i64, scratch_operands = 0 : i64, tpu.core_type = #tpu.core_type<tc>, window_params = [{transform_indices = @transform_0, window_bounds = array<i64: 32, 128>}, {transform_indices = @transform_1, window_bounds = array<i64: 32, 4>}, {transform_indices = @transform_2, window_bounds = array<i64: 32, 4>}, {transform_indices = @transform_3, window_bounds = array<i64: 32, 128>}, {transform_indices = @transform_4, window_bounds = array<i64: 1, 1, 1>}]} {
    %c0 = arith.constant 0 : index
    %c0_0 = arith.constant 0 : index
    %0 = vector.load %arg1[%c0, %c0_0] : memref<32x128xf32, #tpu.memory_space<vmem>>, vector<32x128xf32>
    %c0_1 = arith.constant 0 : index
    %c0_2 = arith.constant 0 : index
    %1 = vector.load %arg2[%c0_1, %c0_2] : memref<32x4xi32, #tpu.memory_space<vmem>>, vector<32x4xi32>
    %2 = tpu.iota {dimensions = array<i32: 1>} : vector<1x128xi32>
    %3 = vector.extract_strided_slice %1 {offsets = [0, 0], sizes = [32, 1], strides = [1, 1]} : vector<32x4xi32> to vector<32x1xi32>
    %4 = vector.broadcast %2 : vector<1x128xi32> to vector<32x128xi32>
    %5 = vector.broadcast %3 : vector<32x1xi32> to vector<32x128xi32>
    %6 = arith.cmpi eq, %4, %5 : vector<32x128xi32>
    %7 = vector.extract_strided_slice %1 {offsets = [0, 1], sizes = [32, 1], strides = [1, 1]} : vector<32x4xi32> to vector<32x1xi32>
    %c32_i32 = arith.constant 32 : i32
    %8 = vector.broadcast %c32_i32 : i32 to vector<32x1xi32>
    %9 = arith.addi %7, %8 : vector<32x1xi32>
    %10 = vector.broadcast %2 : vector<1x128xi32> to vector<32x128xi32>
    %11 = vector.broadcast %9 : vector<32x1xi32> to vector<32x128xi32>
    %12 = arith.cmpi eq, %10, %11 : vector<32x128xi32>
    %13 = arith.ori %6, %12 : vector<32x128xi1>
    %14 = vector.extract_strided_slice %1 {offsets = [0, 2], sizes = [32, 1], strides = [1, 1]} : vector<32x4xi32> to vector<32x1xi32>
    %c64_i32 = arith.constant 64 : i32
    %15 = vector.broadcast %c64_i32 : i32 to vector<32x1xi32>
    %16 = arith.addi %14, %15 : vector<32x1xi32>
    %17 = vector.broadcast %2 : vector<1x128xi32> to vector<32x128xi32>
    %18 = vector.broadcast %16 : vector<32x1xi32> to vector<32x128xi32>
    %19 = arith.cmpi eq, %17, %18 : vector<32x128xi32>
    %20 = arith.ori %13, %19 : vector<32x128xi1>
    %21 = vector.extract_strided_slice %1 {offsets = [0, 3], sizes = [32, 1], strides = [1, 1]} : vector<32x4xi32> to vector<32x1xi32>
    %c96_i32 = arith.constant 96 : i32
    %22 = vector.broadcast %c96_i32 : i32 to vector<32x1xi32>
    %23 = arith.addi %21, %22 : vector<32x1xi32>
    %24 = vector.broadcast %2 : vector<1x128xi32> to vector<32x128xi32>
    %25 = vector.broadcast %23 : vector<32x1xi32> to vector<32x128xi32>
    %26 = arith.cmpi eq, %24, %25 : vector<32x128xi32>
    %27 = arith.ori %20, %26 : vector<32x128xi1>
    %28 = math.absf %0 : vector<32x128xf32>
    %cst = arith.constant 0.000000e+00 : f32
    %29 = vector.broadcast %cst : f32 to vector<32x128xf32>
    %30 = arith.subf %29, %28 : vector<32x128xf32>
    %31 = math.exp %30 : vector<32x128xf32>
    %cst_3 = arith.constant 0.000000e+00 : f32
    %32 = vector.broadcast %cst_3 : f32 to vector<32x128xf32>
    %33 = arith.maximumf %0, %32 : vector<32x128xf32>
    %cst_4 = arith.constant 1.000000e+00 : f32
    %34 = vector.broadcast %cst_4 : f32 to vector<32x128xf32>
    %35 = arith.addf %34, %31 : vector<32x128xf32>
    %36 = math.log %35 : vector<32x128xf32>
    %37 = arith.addf %33, %36 : vector<32x128xf32>
    %cst_5 = arith.constant 1.000000e+00 : f32
    %38 = vector.broadcast %cst_5 : f32 to vector<32x128xf32>
    %39 = arith.addf %38, %31 : vector<32x128xf32>
    %40 = tpu.reciprocal %39 {approx = true} : vector<32x128xf32> -> vector<32x128xf32>
    %cst_6 = arith.constant 0.000000e+00 : f32
    %41 = vector.broadcast %cst_6 : f32 to vector<32x128xf32>
    %42 = arith.cmpf oge, %0, %41 : vector<32x128xf32>
    %cst_7 = arith.constant 1.000000e+00 : f32
    %43 = vector.broadcast %cst_7 : f32 to vector<32x128xf32>
    %44 = arith.select %42, %43, %31 : vector<32x128xi1>, vector<32x128xf32>
    %45 = arith.mulf %44, %40 : vector<32x128xf32>
    %cst_8 = arith.constant 0.000000e+00 : f32
    %46 = vector.broadcast %cst_8 : f32 to vector<32x128xf32>
    %47 = arith.cmpf oge, %0, %46 : vector<32x128xf32>
    %cst_9 = arith.constant 1.000000e+00 : f32
    %48 = vector.broadcast %cst_9 : f32 to vector<32x128xf32>
    %49 = arith.select %47, %31, %48 : vector<32x128xi1>, vector<32x128xf32>
    %50 = arith.mulf %49, %40 : vector<32x128xf32>
    %51 = arith.subf %37, %0 : vector<32x128xf32>
    %52 = arith.select %27, %51, %37 : vector<32x128xi1>, vector<32x128xf32>
    %cst_10 = arith.constant 1.000000e+02 : f32
    %53 = vector.broadcast %cst_10 : f32 to vector<32x128xf32>
    %54 = arith.minimumf %52, %53 : vector<32x128xf32>
    %55 = arith.select %27, %50, %45 : vector<32x128xi1>, vector<32x128xf32>
    %56 = arith.mulf %55, %55 : vector<32x128xf32>
    %cst_11 = arith.constant 2.500000e-01 : f32
    %cst_12 = arith.constant 7.500000e-01 : f32
    %57 = vector.broadcast %cst_11 : f32 to vector<32x128xf32>
    %58 = vector.broadcast %cst_12 : f32 to vector<32x128xf32>
    %59 = arith.select %27, %57, %58 : vector<32x128xi1>, vector<32x128xf32>
    %60 = arith.mulf %54, %59 : vector<32x128xf32>
    %61 = arith.mulf %60, %56 : vector<32x128xf32>
    %c0_13 = arith.constant 0 : index
    %c0_14 = arith.constant 0 : index
    %62 = vector.load %arg4[%c0_13, %c0_14] : memref<32x128xf32, #tpu.memory_space<vmem>>, vector<32x128xf32>
    %cst_15 = arith.constant 9.99999974E-5 : f32
    %63 = vector.broadcast %cst_15 : f32 to vector<32x128xf32>
    %64 = arith.addf %50, %63 : vector<32x128xf32>
    %cst_16 = arith.constant 1.000000e+00 : f32
    %65 = vector.broadcast %cst_16 : f32 to vector<32x128xf32>
    %66 = arith.divf %65, %64 : vector<32x128xf32>
    %cst_17 = arith.constant 2.000000e+00 : f32
    %67 = vector.broadcast %cst_17 : f32 to vector<32x128xf32>
    %68 = arith.subf %67, %62 : vector<32x128xf32>
    %69 = arith.mulf %68, %66 : vector<32x128xf32>
    %cst_18 = arith.constant 1.000000e+00 : f32
    %70 = vector.broadcast %cst_18 : f32 to vector<32x128xf32>
    %71 = arith.select %27, %70, %69 : vector<32x128xi1>, vector<32x128xf32>
    %72 = arith.mulf %61, %71 : vector<32x128xf32>
    %c0_19 = arith.constant 0 : index
    %c0_20 = arith.constant 0 : index
    %73 = vector.load %arg3[%c0_19, %c0_20] : memref<32x4xf32, #tpu.memory_space<vmem>>, vector<32x4xf32>
    %c0_i32 = arith.constant 0 : i32
    %74 = vector.broadcast %c0_i32 : i32 to vector<1x128xi32>
    %75 = arith.cmpi sge, %2, %74 : vector<1x128xi32>
    %c32_i32_21 = arith.constant 32 : i32
    %76 = vector.broadcast %c32_i32_21 : i32 to vector<1x128xi32>
    %77 = arith.cmpi slt, %2, %76 : vector<1x128xi32>
    %78 = arith.andi %75, %77 : vector<1x128xi1>
    %cst_22 = arith.constant 0.000000e+00 : f32
    %79 = vector.shape_cast %78 : vector<1x128xi1> to vector<1x128xi1>
    %80 = vector.broadcast %79 : vector<1x128xi1> to vector<32x128xi1>
    %81 = vector.broadcast %cst_22 : f32 to vector<32x128xf32>
    %82 = arith.select %80, %72, %81 : vector<32x128xi1>, vector<32x128xf32>
    %cst_23 = arith.constant dense<0.000000e+00> : vector<32xf32>
    %83 = vector.multi_reduction <add>, %82, %cst_23 [1] : vector<32x128xf32> to vector<32xf32>
    %84 = vector.shape_cast %83 : vector<32xf32> to vector<32x1xf32>
    %85 = vector.extract_strided_slice %73 {offsets = [0, 0], sizes = [32, 1], strides = [1, 1]} : vector<32x4xf32> to vector<32x1xf32>
    %86 = arith.mulf %84, %85 : vector<32x1xf32>
    %c32_i32_24 = arith.constant 32 : i32
    %87 = vector.broadcast %c32_i32_24 : i32 to vector<1x128xi32>
    %88 = arith.cmpi sge, %2, %87 : vector<1x128xi32>
    %c64_i32_25 = arith.constant 64 : i32
    %89 = vector.broadcast %c64_i32_25 : i32 to vector<1x128xi32>
    %90 = arith.cmpi slt, %2, %89 : vector<1x128xi32>
    %91 = arith.andi %88, %90 : vector<1x128xi1>
    %cst_26 = arith.constant 0.000000e+00 : f32
    %92 = vector.shape_cast %91 : vector<1x128xi1> to vector<1x128xi1>
    %93 = vector.broadcast %92 : vector<1x128xi1> to vector<32x128xi1>
    %94 = vector.broadcast %cst_26 : f32 to vector<32x128xf32>
    %95 = arith.select %93, %72, %94 : vector<32x128xi1>, vector<32x128xf32>
    %cst_27 = arith.constant dense<0.000000e+00> : vector<32xf32>
    %96 = vector.multi_reduction <add>, %95, %cst_27 [1] : vector<32x128xf32> to vector<32xf32>
    %97 = vector.shape_cast %96 : vector<32xf32> to vector<32x1xf32>
    %98 = vector.extract_strided_slice %73 {offsets = [0, 1], sizes = [32, 1], strides = [1, 1]} : vector<32x4xf32> to vector<32x1xf32>
    %99 = arith.mulf %97, %98 : vector<32x1xf32>
    %100 = arith.addf %86, %99 : vector<32x1xf32>
    %c64_i32_28 = arith.constant 64 : i32
    %101 = vector.broadcast %c64_i32_28 : i32 to vector<1x128xi32>
    %102 = arith.cmpi sge, %2, %101 : vector<1x128xi32>
    %c96_i32_29 = arith.constant 96 : i32
    %103 = vector.broadcast %c96_i32_29 : i32 to vector<1x128xi32>
    %104 = arith.cmpi slt, %2, %103 : vector<1x128xi32>
    %105 = arith.andi %102, %104 : vector<1x128xi1>
    %cst_30 = arith.constant 0.000000e+00 : f32
    %106 = vector.shape_cast %105 : vector<1x128xi1> to vector<1x128xi1>
    %107 = vector.broadcast %106 : vector<1x128xi1> to vector<32x128xi1>
    %108 = vector.broadcast %cst_30 : f32 to vector<32x128xf32>
    %109 = arith.select %107, %72, %108 : vector<32x128xi1>, vector<32x128xf32>
    %cst_31 = arith.constant dense<0.000000e+00> : vector<32xf32>
    %110 = vector.multi_reduction <add>, %109, %cst_31 [1] : vector<32x128xf32> to vector<32xf32>
    %111 = vector.shape_cast %110 : vector<32xf32> to vector<32x1xf32>
    %112 = vector.extract_strided_slice %73 {offsets = [0, 2], sizes = [32, 1], strides = [1, 1]} : vector<32x4xf32> to vector<32x1xf32>
    %113 = arith.mulf %111, %112 : vector<32x1xf32>
    %114 = arith.addf %100, %113 : vector<32x1xf32>
    %c96_i32_32 = arith.constant 96 : i32
    %115 = vector.broadcast %c96_i32_32 : i32 to vector<1x128xi32>
    %116 = arith.cmpi sge, %2, %115 : vector<1x128xi32>
    %c128_i32 = arith.constant 128 : i32
    %117 = vector.broadcast %c128_i32 : i32 to vector<1x128xi32>
    %118 = arith.cmpi slt, %2, %117 : vector<1x128xi32>
    %119 = arith.andi %116, %118 : vector<1x128xi1>
    %cst_33 = arith.constant 0.000000e+00 : f32
    %120 = vector.shape_cast %119 : vector<1x128xi1> to vector<1x128xi1>
    %121 = vector.broadcast %120 : vector<1x128xi1> to vector<32x128xi1>
    %122 = vector.broadcast %cst_33 : f32 to vector<32x128xf32>
    %123 = arith.select %121, %72, %122 : vector<32x128xi1>, vector<32x128xf32>
    %cst_34 = arith.constant dense<0.000000e+00> : vector<32xf32>
    %124 = vector.multi_reduction <add>, %123, %cst_34 [1] : vector<32x128xf32> to vector<32xf32>
    %125 = vector.shape_cast %124 : vector<32xf32> to vector<32x1xf32>
    %126 = vector.extract_strided_slice %73 {offsets = [0, 3], sizes = [32, 1], strides = [1, 1]} : vector<32x4xf32> to vector<32x1xf32>
    %127 = arith.mulf %125, %126 : vector<32x1xf32>
    %128 = arith.addf %114, %127 : vector<32x1xf32>
    %cst_35 = arith.constant dense<0.000000e+00> : vector<1xf32>
    %129 = vector.multi_reduction <add>, %128, %cst_35 [0] : vector<32x1xf32> to vector<1xf32>
    %130 = vector.shape_cast %129 : vector<1xf32> to vector<1x1xf32>
    %131 = vector.shape_cast %130 : vector<1x1xf32> to vector<1x1x1xf32>
    %c0_36 = arith.constant 0 : index
    %c0_37 = arith.constant 0 : index
    %c0_38 = arith.constant 0 : index
    %132 = vector.load %arg5[%c0_36, %c0_37, %c0_38] : memref<1x1x1xf32, #tpu.memory_space<vmem>>, vector<1x1x1xf32>
    tpu.vector_store %arg5[%c0_36, %c0_37, %c0_38], %131 {strides = array<i32>} : memref<1x1x1xf32, #tpu.memory_space<vmem>>, vector<1x1x1xf32>,
    return
  }
  func.func @transform_0(%arg0: i32) -> (i32, i32) {
    %c0_i32 = arith.constant 0 : i32
    %c0_i32_0 = arith.constant 0 : i32
    return %arg0, %c0_i32 : i32, i32
  }
  func.func @transform_1(%arg0: i32) -> (i32, i32) {
    %c0_i32 = arith.constant 0 : i32
    %c0_i32_0 = arith.constant 0 : i32
    return %arg0, %c0_i32 : i32, i32
  }
  func.func @transform_2(%arg0: i32) -> (i32, i32) {
    %c0_i32 = arith.constant 0 : i32
    %c0_i32_0 = arith.constant 0 : i32
    return %arg0, %c0_i32 : i32, i32
  }
  func.func @transform_3(%arg0: i32) -> (i32, i32) {
    %c0_i32 = arith.constant 0 : i32
    %c0_i32_0 = arith.constant 0 : i32
    return %arg0, %c0_i32 : i32, i32
  }
  func.func @transform_4(%arg0: i32) -> (i32, i32, i32) {
    %c0_i32 = arith.constant 0 : i32
    %c0_i32_0 = arith.constant 0 : i32
    %c0_i32_1 = arith.constant 0 : i32
    return %arg0, %c0_i32, %c0_i32_0 : i32, i32, i32
  }
}

</mosaic_0001>

<llo_original>
// kernel: tpu_custom_call.1
$region0: #{tpu_custom_call.1}
  #allocation0 [shape = 'u32[]', space=smem, size = 0x4, offset = 0x4, fixed_abs, tag = 'smem constant byte address 0x4 - core index']
  #allocation1 [shape = 'u32[144,128]{1,0:T(1,128)}', space=vmem, size = 0x12000, scoped, tag = 'internal scratch']
  %s0 = inlined_call_operand.vmem [shape: f32[64,128], index: 0, kind: input, shape index: {}]
  %s1 = inlined_call_operand.vmem [shape: s32[64,4], index: 1, kind: input, shape index: {}]
  %s2 = inlined_call_operand.vmem [shape: f32[64,4], index: 2, kind: input, shape index: {}]
  %s3 = inlined_call_operand.vmem [shape: f32[64,128], index: 3, kind: input, shape index: {}]
  %s4 = inlined_call_operand.vmem [shape: f32[2,1,1], index: 4, kind: output, shape index: {}]
  %s5 = sld [smem:[#allocation0]]
  $region49: #{tpu_custom_call.1} parent=0
    _
  %s7 = ssub.s32 1, %s5
  %s8 = scalar_select 0, %s7, %s5
  loop: start=0, step=1, limit=4
  $region2: #{tpu_custom_call.1} parent=0 // loop_pre_header
    _
  $region3: #{tpu_custom_call.1} parent=0 // loop_header
    %s10 = sphi 0, %s14
    %p11 = scmp.ge.s32.totalorder %s10, 4
    %s20 = sphi 0, %s22
    %s23 = sphi 0, %s20
    %s24 = sphi 0, %s23
    %s40 = sphi 0, %s24
    %s46 = sphi 0, %s48
    %s49 = sphi 0, %s46
    %s50 = sphi 0, %s49
    %s66 = sphi 0, %s50
    %s72 = sphi 0, %s74
    %s75 = sphi 0, %s72
    %s76 = sphi 0, %s75
    %s92 = sphi 0, %s76
    %s98 = sphi 0, %s100
    %s101 = sphi 0, %s98
    %s102 = sphi 0, %s101
    %s118 = sphi 0, %s102
    %s124 = sphi 0, %s126
    %s127 = sphi 0, %s124
    %s128 = sphi 0, %s127
    %s144 = sphi 0, %s128
  $region4: #{tpu_custom_call.1} parent=0 // loop_header_branch
    %13 = sbr.rel (%p11) target = $region8
  $region5: #{tpu_custom_call.1} parent=0 // loop_body
    %s15 = ssub.s32 %s10, 1
    %s16 = ssub.s32 %s10, 2
    %s17 = sadd.s32 %s10, 1
    %s18 = ssub.s32 %s10, %s17
    %p19 = scmp.eq.s32.totalorder %s18, 0
    %s21 = sadd.s32 %s20, 1
    %s22 = scalar_select %p19, %s20, %s21
    %p25 = pneg %p19
    %p26 = scmp.eq.s32.totalorder %s10, 1
    %p27 = por %p25, %p26
    %p28 = scmp.ne.s32.totalorder %s20, %s23
    %p29 = scmp.eq.s32.totalorder %s10, 0
    %p30 = por %p28, %p29
    %p31 = scmp.ne.s32.totalorder %s20, %s23
    %p32 = scmp.eq.s32.totalorder %s15, 1
    %p33 = por %p31, %p32
    %p34 = scmp.ne.s32.totalorder %s23, %s24
    %p35 = scmp.eq.s32.totalorder %s15, 0
    %p36 = por %p34, %p35
    %p37 = scmp.ne.s32.totalorder %s23, %s24
    %p38 = scmp.eq.s32.totalorder %s16, 1
    %p39 = por %p37, %p38
    %p41 = scmp.ne.s32.totalorder %s24, %s40
    %p42 = scmp.eq.s32.totalorder %s16, 0
    %p43 = por %p41, %p42
    %s44 = ssub.s32 %s10, %s17
    %p45 = scmp.eq.s32.totalorder %s44, 0
    %s47 = sadd.s32 %s46, 1
    %s48 = scalar_select %p45, %s46, %s47
    %p51 = pneg %p45
    %p52 = scmp.eq.s32.totalorder %s10, 1
    %p53 = por %p51, %p52
    %p54 = scmp.ne.s32.totalorder %s46, %s49
    %p55 = scmp.eq.s32.totalorder %s10, 0
    %p56 = por %p54, %p55
    %p57 = scmp.ne.s32.totalorder %s46, %s49
    %p58 = scmp.eq.s32.totalorder %s15, 1
    %p59 = por %p57, %p58
    %p60 = scmp.ne.s32.totalorder %s49, %s50
    %p61 = scmp.eq.s32.totalorder %s15, 0
    %p62 = por %p60, %p61
    %p63 = scmp.ne.s32.totalorder %s49, %s50
    %p64 = scmp.eq.s32.totalorder %s16, 1
    %p65 = por %p63, %p64
    %p67 = scmp.ne.s32.totalorder %s50, %s66
    %p68 = scmp.eq.s32.totalorder %s16, 0
    %p69 = por %p67, %p68
    %s70 = ssub.s32 %s10, %s17
    %p71 = scmp.eq.s32.totalorder %s70, 0
    %s73 = sadd.s32 %s72, 1
    %s74 = scalar_select %p71, %s72, %s73
    %p77 = pneg %p71
    %p78 = scmp.eq.s32.totalorder %s10, 1
    %p79 = por %p77, %p78
    %p80 = scmp.ne.s32.totalorder %s72, %s75
    %p81 = scmp.eq.s32.totalorder %s10, 0
    %p82 = por %p80, %p81
    %p83 = scmp.ne.s32.totalorder %s72, %s75
    %p84 = scmp.eq.s32.totalorder %s15, 1
    %p85 = por %p83, %p84
    %p86 = scmp.ne.s32.totalorder %s75, %s76
    %p87 = scmp.eq.s32.totalorder %s15, 0
    %p88 = por %p86, %p87
    %p89 = scmp.ne.s32.totalorder %s75, %s76
    %p90 = scmp.eq.s32.totalorder %s16, 1
    %p91 = por %p89, %p90
    %p93 = scmp.ne.s32.totalorder %s76, %s92
    %p94 = scmp.eq.s32.totalorder %s16, 0
    %p95 = por %p93, %p94
    %s96 = ssub.s32 %s10, %s17
    %p97 = scmp.eq.s32.totalorder %s96, 0
    %s99 = sadd.s32 %s98, 1
    %s100 = scalar_select %p97, %s98, %s99
    %p103 = pneg %p97
    %p104 = scmp.eq.s32.totalorder %s10, 1
    %p105 = por %p103, %p104
    %p106 = scmp.ne.s32.totalorder %s98, %s101
    %p107 = scmp.eq.s32.totalorder %s10, 0
    %p108 = por %p106, %p107
    %p109 = scmp.ne.s32.totalorder %s98, %s101
    %p110 = scmp.eq.s32.totalorder %s15, 1
    %p111 = por %p109, %p110
    %p112 = scmp.ne.s32.totalorder %s101, %s102
    %p113 = scmp.eq.s32.totalorder %s15, 0
    %p114 = por %p112, %p113
    %p115 = scmp.ne.s32.totalorder %s101, %s102
    %p116 = scmp.eq.s32.totalorder %s16, 1
    %p117 = por %p115, %p116
    %p119 = scmp.ne.s32.totalorder %s102, %s118
    %p120 = scmp.eq.s32.totalorder %s16, 0
    %p121 = por %p119, %p120
    %s122 = ssub.s32 %s10, %s17
    %p123 = scmp.eq.s32.totalorder %s122, 0
    %s125 = sadd.s32 %s124, 1
    %s126 = scalar_select %p123, %s124, %s125
    %p129 = pneg %p123
    %p130 = scmp.eq.s32.totalorder %s10, 1
    %p131 = por %p129, %p130
    %p132 = scmp.ne.s32.totalorder %s124, %s127
    %p133 = scmp.eq.s32.totalorder %s10, 0
    %p134 = por %p132, %p133
    %p135 = scmp.ne.s32.totalorder %s124, %s127
    %p136 = scmp.eq.s32.totalorder %s15, 1
    %p137 = por %p135, %p136
    %p138 = scmp.ne.s32.totalorder %s127, %s128
    %p139 = scmp.eq.s32.totalorder %s15, 0
    %p140 = por %p138, %p139
    %p141 = scmp.ne.s32.totalorder %s127, %s128
    %p142 = scmp.eq.s32.totalorder %s16, 1
    %p143 = por %p141, %p142
    %p145 = scmp.ne.s32.totalorder %s128, %s144
    %p146 = scmp.eq.s32.totalorder %s16, 0
    %p147 = por %p145, %p146
    %p148 = scmp.le.s32.totalorder 1, %s10
    %p149 = scmp.lt.s32.totalorder %s10, 3
    %p150 = pnand %p148, %p149
    %p151 = pneg %p150
    // Predicated region
    $region9: #{tpu_custom_call.1} parent=5 // pred_check
      _
    $region10: #{tpu_custom_call.1} parent=5 // pred_check_branch
      %153 = sbr.rel (%p150) target = $region12
    $region11: #{tpu_custom_call.1} parent=5 // pred_region
      %s154 = ssub.s32 %s10, 1
    $region12: #{tpu_custom_call.1} parent=5 // pred_fallthru
      _
    %p155 = scmp.lt.s32.totalorder %s10, 2
    // Predicated region
    $region13: #{tpu_custom_call.1} parent=5 // pred_check
      %p156 = pneg %p155
    $region14: #{tpu_custom_call.1} parent=5 // pred_check_branch
      %158 = sbr.rel (%p156) target = $region16
    $region15: #{tpu_custom_call.1} parent=5 // pred_region
      // Predicated region
      $region17: #{tpu_custom_call.1} parent=15 // pred_check
        %p159 = pneg %p30
      $region18: #{tpu_custom_call.1} parent=15 // pred_check_branch
        %161 = sbr.rel (%p159) target = $region20
      $region19: #{tpu_custom_call.1} parent=15 // pred_region
        %s162 = smul.u32 4, %s10
        %p163 = scmp.lt.s32.totalorder %s162, 7
        %s164 = scalar_select %p163, %s162, 7
        %s165 = smul.addr %s164, 8
        %s166 = scalar_lea.vmem %s0, %s165
        %s167 = smul.u32 4, %s10
      $region20: #{tpu_custom_call.1} parent=15 // pred_fallthru
        _
      // Predicated region
      $region21: #{tpu_custom_call.1} parent=15 // pred_check
        %p168 = pneg %p56
      $region22: #{tpu_custom_call.1} parent=15 // pred_check_branch
        %170 = sbr.rel (%p168) target = $region24
      $region23: #{tpu_custom_call.1} parent=15 // pred_region
        %s171 = smul.u32 4, %s10
        %p172 = scmp.lt.s32.totalorder %s171, 7
        %s173 = scalar_select %p172, %s171, 7
        %s174 = smul.addr %s173, 8
        %s175 = scalar_lea.vmem %s1, %s174
        %s176 = smul.u32 4, %s10
      $region24: #{tpu_custom_call.1} parent=15 // pred_fallthru
        _
      // Predicated region
      $region25: #{tpu_custom_call.1} parent=15 // pred_check
        %p177 = pneg %p82
      $region26: #{tpu_custom_call.1} parent=15 // pred_check_branch
        %179 = sbr.rel (%p177) target = $region28
      $region27: #{tpu_custom_call.1} parent=15 // pred_region
        %s180 = smul.u32 4, %s10
        %p181 = scmp.lt.s32.totalorder %s180, 7
        %s182 = scalar_select %p181, %s180, 7
        %s183 = smul.addr %s182, 8
        %s184 = scalar_lea.vmem %s2, %s183
        %s185 = smul.u32 4, %s10
      $region28: #{tpu_custom_call.1} parent=15 // pred_fallthru
        _
      // Predicated region
      $region29: #{tpu_custom_call.1} parent=15 // pred_check
        %p186 = pneg %p108
      $region30: #{tpu_custom_call.1} parent=15 // pred_check_branch
        %188 = sbr.rel (%p186) target = $region32
      $region31: #{tpu_custom_call.1} parent=15 // pred_region
        %s189 = smul.u32 4, %s10
        %p190 = scmp.lt.s32.totalorder %s189, 7
        %s191 = scalar_select %p190, %s189, 7
        %s192 = smul.addr %s191, 8
        %s193 = scalar_lea.vmem %s3, %s192
        %s194 = smul.u32 4, %s10
      $region32: #{tpu_custom_call.1} parent=15 // pred_fallthru
        _
    $region16: #{tpu_custom_call.1} parent=5 // pred_fallthru
      _
    %p195 = scmp.le.s32.totalorder 1, %s10
    %p196 = scmp.lt.s32.totalorder %s10, 3
    %p197 = pnand %p195, %p196
    %p198 = pneg %p197
    // Predicated region
    $region33: #{tpu_custom_call.1} parent=5 // pred_check
      _
    $region34: #{tpu_custom_call.1} parent=5 // pred_check_branch
      %200 = sbr.rel (%p197) target = $region36
    $region35: #{tpu_custom_call.1} parent=5 // pred_region
      %s201 = ssub.s32 %s10, 1
      %s202 = smul.u32 4, %s15
      %p203 = scmp.lt.s32.totalorder %s202, 7
      %s204 = scalar_select %p203, %s202, 7
      %s205 = smul.addr %s204, 8
      %s206 = scalar_lea.vmem %s0, %s205
      %p207 = pneg %p36
      %p208 = pneg %p33
      %s209 = smul.u32 4, %s15
      %p210 = scmp.lt.s32.totalorder %s209, 7
      %s211 = scalar_select %p210, %s209, 7
      %s212 = smul.addr %s211, 8
      %s213 = scalar_lea.vmem %s1, %s212
      %p214 = pneg %p62
      %p215 = pneg %p59
      %s216 = smul.u32 4, %s15
      %p217 = scmp.lt.s32.totalorder %s216, 7
      %s218 = scalar_select %p217, %s216, 7
      %s219 = smul.addr %s218, 8
      %s220 = scalar_lea.vmem %s2, %s219
      %p221 = pneg %p88
      %p222 = pneg %p85
      %s223 = smul.u32 4, %s15
      %p224 = scmp.lt.s32.totalorder %s223, 7
      %s225 = scalar_select %p224, %s223, 7
      %s226 = smul.addr %s225, 8
      %s227 = scalar_lea.vmem %s3, %s226
      %p228 = pneg %p114
      %p229 = pneg %p111
      %p230 = pneg %p140
      %p231 = pneg %p137
      %p232 = scmp.lt.s32.totalorder %s15, 1
      %s233 = scalar_select %p232, %s15, 1
      %s234 = scalar_lea.vmem %s4, %s233
      %s235 = smul.u32 4, %s15
      %p236 = scmp.lt.s32.totalorder %s235, 7
      %s237 = scalar_select %p236, %s235, 7
      %s238 = smul.addr %s237, 8
      %s239 = scalar_lea.vmem %s0, %s238
      %s240 = smul.u32 4, %s15
      %s241 = smul.u32 4, %s15
      %p242 = scmp.lt.s32.totalorder %s241, 7
      %s243 = scalar_select %p242, %s241, 7
      %s244 = smul.addr %s243, 8
      %s245 = scalar_lea.vmem %s1, %s244
      %s246 = smul.u32 4, %s15
      %s247 = smul.u32 4, %s15
      %p248 = scmp.lt.s32.totalorder %s247, 7
      %s249 = scalar_select %p248, %s247, 7
      %s250 = smul.addr %s249, 8
      %s251 = scalar_lea.vmem %s2, %s250
      %s252 = smul.u32 4, %s15
      %s253 = smul.u32 4, %s15
      %p254 = scmp.lt.s32.totalorder %s253, 7
      %s255 = scalar_select %p254, %s253, 7
      %s256 = smul.addr %s255, 8
      %s257 = scalar_lea.vmem %s3, %s256
      %s258 = smul.u32 4, %s15
      %p259 = scmp.lt.s32.totalorder %s15, 1
      %s260 = scalar_select %p259, %s15, 1
      %s261 = scalar_lea.vmem %s4, %s260
      %v262 = vld [vmem:[%s239] sm:$0xff]
      %v263 = vld [vmem:[%s239 + $0x8] sm:$0xff]
      %v264 = vld [vmem:[%s239 + $0x10] sm:$0xff]
      %v265 = vld [vmem:[%s239 + $0x18] sm:$0xff]
      %v266 = vld [vmem:[%s245] sm:$0xff]
      %v267 = vld [vmem:[%s245 + $0x8] sm:$0xff]
      %v268 = vld [vmem:[%s245 + $0x10] sm:$0xff]
      %v269 = vld [vmem:[%s245 + $0x18] sm:$0xff]
      %v270 = vlaneseq
      %v271 = vand.u32 %v270, 127
      %272 = vset.pattern.permute.xlu0 0
      %273 = vperm.xlu0 %272, %v266
      %v274 = vpop.permute.xlu0 %273
      %275 = vset.pattern.permute.xlu0 0
      %276 = vperm.xlu0 %275, %v267
      %v277 = vpop.permute.xlu0 %276
      %278 = vset.pattern.permute.xlu0 0
      %279 = vperm.xlu0 %278, %v268
      %v280 = vpop.permute.xlu0 %279
      %281 = vset.pattern.permute.xlu0 0
      %282 = vperm.xlu0 %281, %v269
      %v283 = vpop.permute.xlu0 %282
      %vm284 = vcmp.eq.s32.totalorder %v271, %v274
      %vm285 = vcmp.eq.s32.totalorder %v271, %v277
      %vm286 = vcmp.eq.s32.totalorder %v271, %v280
      %vm287 = vcmp.eq.s32.totalorder %v271, %v283
      %v288 = vadd.s32 %v266, 32
      %v289 = vadd.s32 %v267, 32
      %v290 = vadd.s32 %v268, 32
      %v291 = vadd.s32 %v269, 32
      %292 = vset.pattern.permute.xlu0 1
      %293 = vperm.xlu0 %292, %v288
      %v294 = vpop.permute.xlu0 %293
      %295 = vset.pattern.permute.xlu0 1
      %296 = vperm.xlu0 %295, %v289
      %v297 = vpop.permute.xlu0 %296
      %298 = vset.pattern.permute.xlu0 1
      %299 = vperm.xlu0 %298, %v290
      %v300 = vpop.permute.xlu0 %299
      %301 = vset.pattern.permute.xlu0 1
      %302 = vperm.xlu0 %301, %v291
      %v303 = vpop.permute.xlu0 %302
      %vm304 = vcmp.eq.s32.totalorder %v271, %v294
      %vm305 = vcmp.eq.s32.totalorder %v271, %v297
      %vm306 = vcmp.eq.s32.totalorder %v271, %v300
      %vm307 = vcmp.eq.s32.totalorder %v271, %v303
      %vm308 = vmor %vm284, %vm304
      %vm309 = vmor %vm285, %vm305
      %vm310 = vmor %vm286, %vm306
      %vm311 = vmor %vm287, %vm307
      %v312 = vadd.s32 %v266, 64
      %v313 = vadd.s32 %v267, 64
      %v314 = vadd.s32 %v268, 64
      %v315 = vadd.s32 %v269, 64
      %316 = vset.pattern.permute.xlu0 2
      %317 = vperm.xlu0 %316, %v312
      %v318 = vpop.permute.xlu0 %317
      %319 = vset.pattern.permute.xlu0 2
      %320 = vperm.xlu0 %319, %v313
      %v321 = vpop.permute.xlu0 %320
      %322 = vset.pattern.permute.xlu0 2
      %323 = vperm.xlu0 %322, %v314
      %v324 = vpop.permute.xlu0 %323
      %325 = vset.pattern.permute.xlu0 2
      %326 = vperm.xlu0 %325, %v315
      %v327 = vpop.permute.xlu0 %326
      %vm328 = vcmp.eq.s32.totalorder %v271, %v318
      %vm329 = vcmp.eq.s32.totalorder %v271, %v321
      %vm330 = vcmp.eq.s32.totalorder %v271, %v324
      %vm331 = vcmp.eq.s32.totalorder %v271, %v327
      %vm332 = vmor %vm308, %vm328
      %vm333 = vmor %vm309, %vm329
      %vm334 = vmor %vm310, %vm330
      %vm335 = vmor %vm311, %vm331
      %v336 = vadd.s32 %v266, 96
      %v337 = vadd.s32 %v267, 96
      %v338 = vadd.s32 %v268, 96
      %v339 = vadd.s32 %v269, 96
      %340 = vset.pattern.permute.xlu0 3
      %341 = vperm.xlu0 %340, %v336
      %v342 = vpop.permute.xlu0 %341
      %343 = vset.pattern.permute.xlu0 3
      %344 = vperm.xlu0 %343, %v337
      %v345 = vpop.permute.xlu0 %344
      %346 = vset.pattern.permute.xlu0 3
      %347 = vperm.xlu0 %346, %v338
      %v348 = vpop.permute.xlu0 %347
      %349 = vset.pattern.permute.xlu0 3
      %350 = vperm.xlu0 %349, %v339
      %v351 = vpop.permute.xlu0 %350
      %vm352 = vcmp.eq.s32.totalorder %v271, %v342
      %vm353 = vcmp.eq.s32.totalorder %v271, %v345
      %vm354 = vcmp.eq.s32.totalorder %v271, %v348
      %vm355 = vcmp.eq.s32.totalorder %v271, %v351
      %vm356 = vmor %vm332, %vm352
      %vm357 = vmor %vm333, %vm353
      %vm358 = vmor %vm334, %vm354
      %vm359 = vmor %vm335, %vm355
      %v360 = vand.u32 2147483647, %v262
      %v361 = vand.u32 2147483647, %v263
      %v362 = vand.u32 2147483647, %v264
      %v363 = vand.u32 2147483647, %v265
      %v364 = vsub.f32 0.0, %v360
      %v365 = vsub.f32 0.0, %v361
      %v366 = vsub.f32 0.0, %v362
      %v367 = vsub.f32 0.0, %v363
      %v368 = vmul.f32 %v364, 1.442695
      %v369 = vpow.pop %v368
      %v370 = vmul.f32 %v365, 1.442695
      %v371 = vpow.pop %v370
      %v372 = vmul.f32 %v366, 1.442695
      %v373 = vpow.pop %v372
      %v374 = vmul.f32 %v367, 1.442695
      %v375 = vpow.pop %v374
      %v376 = vmax.f32 %v262, 0.0
      %v377 = vmax.f32 %v263, 0.0
      %v378 = vmax.f32 %v264, 0.0
      %v379 = vmax.f32 %v265, 0.0
      %v380 = vadd.f32 %v369, 1.0
      %v381 = vadd.f32 %v371, 1.0
      %v382 = vadd.f32 %v373, 1.0
      %v383 = vadd.f32 %v375, 1.0
      %v384 = vlog2.pop %v380
      %v385 = vmul.f32 %v384, 0.6931472
      %v386 = vlog2.pop %v381
      %v387 = vmul.f32 %v386, 0.6931472
      %v388 = vlog2.pop %v382
      %v389 = vmul.f32 %v388, 0.6931472
      %v390 = vlog2.pop %v383
      %v391 = vmul.f32 %v390, 0.6931472
      %v392 = vadd.f32 %v376, %v385
      %v393 = vadd.f32 %v377, %v387
      %v394 = vadd.f32 %v378, %v389
      %v395 = vadd.f32 %v379, %v391
      %v396 = vrcp.pop %v380
      %v397 = vrcp.pop %v381
      %v398 = vrcp.pop %v382
      %v399 = vrcp.pop %v383
      %vm400 = vcmp.ge.f32.partialorder %v262, 0.0
      %vm401 = vcmp.ge.f32.partialorder %v263, 0.0
      %vm402 = vcmp.ge.f32.partialorder %v264, 0.0
      %vm403 = vcmp.ge.f32.partialorder %v265, 0.0
      %v404 = vsel %vm400, 1.0, %v369
      %v405 = vsel %vm401, 1.0, %v371
      %v406 = vsel %vm402, 1.0, %v373
      %v407 = vsel %vm403, 1.0, %v375
      %v408 = vmul.f32 %v404, %v396
      %v409 = vmul.f32 %v405, %v397
      %v410 = vmul.f32 %v406, %v398
      %v411 = vmul.f32 %v407, %v399
      %v412 = vsel %vm400, %v369, 1.0
      %v413 = vsel %vm401, %v371, 1.0
      %v414 = vsel %vm402, %v373, 1.0
      %v415 = vsel %vm403, %v375, 1.0
      %v416 = vmul.f32 %v412, %v396
      %v417 = vmul.f32 %v413, %v397
      %v418 = vmul.f32 %v414, %v398
      %v419 = vmul.f32 %v415, %v399
      %v420 = vsub.f32 %v392, %v262
      %v421 = vsub.f32 %v393, %v263
      %v422 = vsub.f32 %v394, %v264
      %v423 = vsub.f32 %v395, %v265
      %v424 = vsel %vm356, %v420, %v392
      %v425 = vsel %vm357, %v421, %v393
      %v426 = vsel %vm358, %v422, %v394
      %v427 = vsel %vm359, %v423, %v395
      %v428 = vmin.f32 %v424, 100.0
      %v429 = vmin.f32 %v425, 100.0
      %v430 = vmin.f32 %v426, 100.0
      %v431 = vmin.f32 %v427, 100.0
      %v432 = vsel %vm356, %v416, %v408
      %v433 = vsel %vm357, %v417, %v409
      %v434 = vsel %vm358, %v418, %v410
      %v435 = vsel %vm359, %v419, %v411
      %v436 = vmul.f32 %v432, %v432
      %v437 = vmul.f32 %v433, %v433
      %v438 = vmul.f32 %v434, %v434
      %v439 = vmul.f32 %v435, %v435
      %v440 = vsel %vm356, 0.25, 0.75
      %v441 = vsel %vm357, 0.25, 0.75
      %v442 = vsel %vm358, 0.25, 0.75
      %v443 = vsel %vm359, 0.25, 0.75
      %v444 = vmul.f32 %v428, %v440
      %v445 = vmul.f32 %v429, %v441
      %v446 = vmul.f32 %v430, %v442
      %v447 = vmul.f32 %v431, %v443
      %v448 = vmul.f32 %v444, %v436
      %v449 = vmul.f32 %v445, %v437
      %v450 = vmul.f32 %v446, %v438
      %v451 = vmul.f32 %v447, %v439
      %v452 = vld [vmem:[%s257] sm:$0xff]
      %v453 = vld [vmem:[%s257 + $0x8] sm:$0xff]
      %v454 = vld [vmem:[%s257 + $0x10] sm:$0xff]
      %v455 = vld [vmem:[%s257 + $0x18] sm:$0xff]
      %v456 = vadd.f32 %v416, 0.0001
      %v457 = vadd.f32 %v417, 0.0001
      %v458 = vadd.f32 %v418, 0.0001
      %v459 = vadd.f32 %v419, 0.0001
      %v460 = vrcp.pop %v456
      %v461 = vmul.f32 1.0, %v460
      %v462 = vrcp.pop %v457
      %v463 = vmul.f32 1.0, %v462
      %v464 = vrcp.pop %v458
      %v465 = vmul.f32 1.0, %v464
      %v466 = vrcp.pop %v459
      %v467 = vmul.f32 1.0, %v466
      %v468 = vsub.f32 2.0, %v452
      %v469 = vsub.f32 2.0, %v453
      %v470 = vsub.f32 2.0, %v454
      %v471 = vsub.f32 2.0, %v455
      %v472 = vmul.f32 %v468, %v461
      %v473 = vmul.f32 %v469, %v463
      %v474 = vmul.f32 %v470, %v465
      %v475 = vmul.f32 %v471, %v467
      %v476 = vsel %vm356, 1.0, %v472
      %v477 = vsel %vm357, 1.0, %v473
      %v478 = vsel %vm358, 1.0, %v474
      %v479 = vsel %vm359, 1.0, %v475
      %v480 = vmul.f32 %v448, %v476
      %v481 = vmul.f32 %v449, %v477
      %v482 = vmul.f32 %v450, %v478
      %v483 = vmul.f32 %v451, %v479
      %v484 = vld [vmem:[%s251] sm:$0xff]
      %v485 = vld [vmem:[%s251 + $0x8] sm:$0xff]
      %v486 = vld [vmem:[%s251 + $0x10] sm:$0xff]
      %v487 = vld [vmem:[%s251 + $0x18] sm:$0xff]
      %vm488 = vcmp.ge.s32.totalorder %v271, 0
      %vm489 = vcmp.lt.s32.totalorder %v271, 32
      %vm490 = vmand %vm488, %vm489
      %v491 = vsel %vm490, 1, 0
      %vm492 = vcmp.eq.s32.totalorder %v491, 1
      %v493 = vsel %vm492, %v480, 0.0
      %v494 = vsel %vm492, %v481, 0.0
      %v495 = vsel %vm492, %v482, 0.0
      %v496 = vsel %vm492, %v483, 0.0
      %497 = vadd.xlane.f32.xlu0 %v493
      %v498 = vpop.xlane.xlu0 %497
      %499 = vadd.xlane.f32.xlu0 %v494
      %v500 = vpop.xlane.xlu0 %499
      %501 = vadd.xlane.f32.xlu0 %v495
      %v502 = vpop.xlane.xlu0 %501
      %503 = vadd.xlane.f32.xlu0 %v496
      %v504 = vpop.xlane.xlu0 %503
      %v505 = vmul.f32 %v498, %v484
      %v506 = vmul.f32 %v500, %v485
      %v507 = vmul.f32 %v502, %v486
      %v508 = vmul.f32 %v504, %v487
      %vm509 = vcmp.ge.s32.totalorder %v271, 32
      %vm510 = vcmp.lt.s32.totalorder %v271, 64
      %vm511 = vmand %vm509, %vm510
      %v512 = vsel %vm511, 1, 0
      %vm513 = vcmp.eq.s32.totalorder %v512, 1
      %v514 = vsel %vm513, %v480, 0.0
      %v515 = vsel %vm513, %v481, 0.0
      %v516 = vsel %vm513, %v482, 0.0
      %v517 = vsel %vm513, %v483, 0.0
      %518 = vadd.xlane.f32.xlu0 %v514
      %v519 = vpop.xlane.xlu0 %518
      %520 = vadd.xlane.f32.xlu0 %v515
      %v521 = vpop.xlane.xlu0 %520
      %522 = vadd.xlane.f32.xlu0 %v516
      %v523 = vpop.xlane.xlu0 %522
      %524 = vadd.xlane.f32.xlu0 %v517
      %v525 = vpop.xlane.xlu0 %524
      %v526 = vmul.f32 %v519, %v484
      %v527 = vmul.f32 %v521, %v485
      %v528 = vmul.f32 %v523, %v486
      %v529 = vmul.f32 %v525, %v487
      %534 = vrot.lane.b32.xlu0 %v526, 127
      %v535 = vpop.permute.xlu0 %534
      %536 = vrot.lane.b32.xlu0 %v527, 127
      %v537 = vpop.permute.xlu0 %536
      %538 = vrot.lane.b32.xlu0 %v528, 127
      %v539 = vpop.permute.xlu0 %538
      %540 = vrot.lane.b32.xlu0 %v529, 127
      %v541 = vpop.permute.xlu0 %540
      %v546 = vadd.f32 %v505, %v535
      %v547 = vadd.f32 %v506, %v537
      %v548 = vadd.f32 %v507, %v539
      %v549 = vadd.f32 %v508, %v541
      %vm550 = vcmp.ge.s32.totalorder %v271, 64
      %vm551 = vcmp.lt.s32.totalorder %v271, 96
      %vm552 = vmand %vm550, %vm551
      %v553 = vsel %vm552, 1, 0
      %vm554 = vcmp.eq.s32.totalorder %v553, 1
      %v555 = vsel %vm554, %v480, 0.0
      %v556 = vsel %vm554, %v481, 0.0
      %v557 = vsel %vm554, %v482, 0.0
      %v558 = vsel %vm554, %v483, 0.0
      %559 = vadd.xlane.f32.xlu0 %v555
      %v560 = vpop.xlane.xlu0 %559
      %561 = vadd.xlane.f32.xlu0 %v556
      %v562 = vpop.xlane.xlu0 %561
      %563 = vadd.xlane.f32.xlu0 %v557
      %v564 = vpop.xlane.xlu0 %563
      %565 = vadd.xlane.f32.xlu0 %v558
      %v566 = vpop.xlane.xlu0 %565
      %v567 = vmul.f32 %v560, %v484
      %v568 = vmul.f32 %v562, %v485
      %v569 = vmul.f32 %v564, %v486
      %v570 = vmul.f32 %v566, %v487
      %575 = vrot.lane.b32.xlu0 %v567, 126
      %v576 = vpop.permute.xlu0 %575
      %577 = vrot.lane.b32.xlu0 %v568, 126
      %v578 = vpop.permute.xlu0 %577
      %579 = vrot.lane.b32.xlu0 %v569, 126
      %v580 = vpop.permute.xlu0 %579
      %581 = vrot.lane.b32.xlu0 %v570, 126
      %v582 = vpop.permute.xlu0 %581
      %v587 = vadd.f32 %v546, %v576
      %v588 = vadd.f32 %v547, %v578
      %v589 = vadd.f32 %v548, %v580
      %v590 = vadd.f32 %v549, %v582
      %vm591 = vcmp.ge.s32.totalorder %v271, 96
      %vm592 = vcmp.lt.s32.totalorder %v271, 128
      %vm593 = vmand %vm591, %vm592
      %v594 = vsel %vm593, 1, 0
      %vm595 = vcmp.eq.s32.totalorder %v594, 1
      %v596 = vsel %vm595, %v480, 0.0
      %v597 = vsel %vm595, %v481, 0.0
      %v598 = vsel %vm595, %v482, 0.0
      %v599 = vsel %vm595, %v483, 0.0
      %600 = vadd.xlane.f32.xlu0 %v596
      %v601 = vpop.xlane.xlu0 %600
      %602 = vadd.xlane.f32.xlu0 %v597
      %v603 = vpop.xlane.xlu0 %602
      %604 = vadd.xlane.f32.xlu0 %v598
      %v605 = vpop.xlane.xlu0 %604
      %606 = vadd.xlane.f32.xlu0 %v599
      %v607 = vpop.xlane.xlu0 %606
      %v608 = vmul.f32 %v601, %v484
      %v609 = vmul.f32 %v603, %v485
      %v610 = vmul.f32 %v605, %v486
      %v611 = vmul.f32 %v607, %v487
      %616 = vrot.lane.b32.xlu0 %v608, 125
      %v617 = vpop.permute.xlu0 %616
      %618 = vrot.lane.b32.xlu0 %v609, 125
      %v619 = vpop.permute.xlu0 %618
      %620 = vrot.lane.b32.xlu0 %v610, 125
      %v621 = vpop.permute.xlu0 %620
      %622 = vrot.lane.b32.xlu0 %v611, 125
      %v623 = vpop.permute.xlu0 %622
      %v628 = vadd.f32 %v587, %v617
      %v629 = vadd.f32 %v588, %v619
      %v630 = vadd.f32 %v589, %v621
      %v631 = vadd.f32 %v590, %v623
      %vm632 = vcmask 7168
      %v633 = vsel %vm632, %v628, 0.0
      %v634 = vsel %vm632, %v629, 0.0
      %v635 = vadd.f32 %v633, %v634
      %v636 = vsel %vm632, %v630, 0.0
      %v637 = vadd.f32 %v635, %v636
      %v638 = vsel %vm632, %v631, 0.0
      %v639 = vadd.f32 %v637, %v638
      %v640 = vrot.slane %v639, 4
      %v641 = vadd.f32 %v639, %v640
      %v642 = vrot.slane %v641, 2
      %v643 = vadd.f32 %v641, %v642
      %v644 = vrot.slane %v643, 1
      %v645 = vadd.f32 %v643, %v644
      %vm646 = vcmask 0
      %647 = vst.msk [vmem:[%s261] sm:$0x1] %vm646, %v645
      %p648 = scmp.lt.s32.totalorder %s15, 1
      %s649 = scalar_select %p648, %s15, 1
      %s650 = scalar_lea.vmem %s4, %s649
      // Predicated region
      $region37: #{tpu_custom_call.1} parent=35 // pred_check
        %p651 = pneg %p137
      $region38: #{tpu_custom_call.1} parent=35 // pred_check_branch
        %653 = sbr.rel (%p651) target = $region40
      $region39: #{tpu_custom_call.1} parent=35 // pred_region
        _
      $region40: #{tpu_custom_call.1} parent=35 // pred_fallthru
        _
    $region36: #{tpu_custom_call.1} parent=5 // pred_fallthru
      _
    %p654 = scmp.le.s32.totalorder 2, %s10
    // Predicated region
    $region41: #{tpu_custom_call.1} parent=5 // pred_check
      %p655 = pneg %p654
    $region42: #{tpu_custom_call.1} parent=5 // pred_check_branch
      %657 = sbr.rel (%p655) target = $region44
    $region43: #{tpu_custom_call.1} parent=5 // pred_region
      %s658 = ssub.s32 %s10, 2
      // Predicated region
      $region45: #{tpu_custom_call.1} parent=43 // pred_check
        %p659 = pneg %p143
      $region46: #{tpu_custom_call.1} parent=43 // pred_check_branch
        %661 = sbr.rel (%p659) target = $region48
      $region47: #{tpu_custom_call.1} parent=43 // pred_region
        %p662 = scmp.lt.s32.totalorder %s16, 1
        %s663 = scalar_select %p662, %s16, 1
        %s664 = scalar_lea.vmem %s4, %s663
      $region48: #{tpu_custom_call.1} parent=43 // pred_fallthru
        _
    $region44: #{tpu_custom_call.1} parent=5 // pred_fallthru
      _
  $region6: #{tpu_custom_call.1} parent=0 // loop_footer
    %s14 = sadd.s32 1, %s10
  $region7: #{tpu_custom_call.1} parent=0 // loop_footer_branch
    %9 = sbr.rel target = $region3
  $region8: #{tpu_custom_call.1} parent=0 // loop_exit
    _

</llo_original>
